<compile_context>
chip_gen: v6e
topology: v6e:2x2x1
jax: 0.10.0
libtpu: 0.0.40
codegen_flags: <defaults>
</compile_context>

<pallas_src>
import functools

import jax
import jax.numpy as jnp
from jax.experimental import pallas as pl
from jax.experimental.pallas import tpu as pltpu

LANE = 128      # TPU lane width — feature dims padded to this
SUBLANE = 8     # sublane granularity — batch tile padded to this


def _round_up(n, m):
    return ((n + m - 1) // m) * m


def _autoencoder_kernel(x_ref,
                        w1_ref, b1_ref,
                        w2_ref, b2_ref,
                        w3_ref, b3_ref,
                        w4_ref, b4_ref,
                        out_ref):
    """Fused 4-layer MLP forward on one (tb, d_in) batch tile.

    Weights are bf16 (lane-dense, resident across grid steps); activations are
    cast to the weight dtype right before each MXU matmul; accumulation and the
    bias/ReLU epilogue are f32.
    """
    mm_dtype = w1_ref.dtype

    # Hoist bias loads once (JAX does not CSE re-broadcasts across layers).
    b1 = b1_ref[...]
    b2 = b2_ref[...]
    b3 = b3_ref[...]
    b4 = b4_ref[...]

    x = x_ref[...].astype(mm_dtype)

    # encoder layer 1: Linear(input_dim, hidden) + ReLU
    h = jnp.dot(x, w1_ref[...], preferred_element_type=jnp.float32) + b1
    h = jnp.maximum(h, 0.0)

    # encoder layer 2: Linear(hidden, hidden//2) + ReLU
    h = jnp.dot(h.astype(mm_dtype), w2_ref[...],
                preferred_element_type=jnp.float32) + b2
    h = jnp.maximum(h, 0.0)

    # decoder layer 1: Linear(hidden//2, hidden) + ReLU
    h = jnp.dot(h.astype(mm_dtype), w3_ref[...],
                preferred_element_type=jnp.float32) + b3
    h = jnp.maximum(h, 0.0)

    # decoder layer 2: Linear(hidden, input_dim)  (no activation)
    y = jnp.dot(h.astype(mm_dtype), w4_ref[...],
                preferred_element_type=jnp.float32) + b4

    out_ref[...] = y.astype(out_ref.dtype)


@functools.partial(jax.jit, static_argnames=("block_batch", "matmul_dtype"))
def autoencoder_forward(x, params, *, block_batch=512, matmul_dtype=jnp.bfloat16):
    """x: [batch, input_dim] f32. params: (in,out) weights, (1,out) biases (f32)."""
    batch, input_dim = x.shape
    hidden = params["w1"].shape[1]
    h2 = params["w2"].shape[1]

    # ---- lane-dense padded feature dims (exact under zero padding) ----
    d_in = _round_up(input_dim, LANE)
    d_h = _round_up(hidden, LANE)
    d_h2 = _round_up(h2, LANE)

    def pad2(a, rows, cols):
        return jnp.pad(a, ((0, rows - a.shape[0]), (0, cols - a.shape[1])))

    # Weights -> bf16 (halves DMA bytes; f32 accumulation preserved in-kernel).
    w1 = pad2(params["w1"], d_in, d_h).astype(matmul_dtype)
    w2 = pad2(params["w2"], d_h, d_h2).astype(matmul_dtype)
    w3 = pad2(params["w3"], d_h2, d_h).astype(matmul_dtype)
    w4 = pad2(params["w4"], d_h, d_in).astype(matmul_dtype)
    # Biases stay f32 (epilogue is f32 everywhere — also the right call on v5e).
    b1 = pad2(params["b1"], 1, d_h)
    b2 = pad2(params["b2"], 1, d_h2)
    b3 = pad2(params["b3"], 1, d_h)
    b4 = pad2(params["b4"], 1, d_in)

    # ---- batch tiling: big tiles for HBM-roofline DMA, capped by actual batch ----
    tb = min(block_batch, _round_up(batch, SUBLANE))
    tb = _round_up(tb, SUBLANE)
    padded_batch = _round_up(batch, tb)
    xp = jnp.pad(x, ((0, padded_batch - batch), (0, d_in - input_dim)))

    grid = (padded_batch // tb,)

    x_spec = pl.BlockSpec((tb, d_in), lambda i: (i, 0))
    out_spec = pl.BlockSpec((tb, d_in), lambda i: (i, 0))

    def const_spec(shape):
        # Same block every grid step -> weights/biases stay resident in VMEM.
        return pl.BlockSpec(shape, lambda i: (0, 0))

    # Advisory cost estimate for the XLA scheduler.
    flops = 2 * padded_batch * (d_in * d_h + d_h * d_h2 + d_h2 * d_h + d_h * d_in)
    weight_bytes = sum(int(w.size) * w.dtype.itemsize for w in (w1, w2, w3, w4))
    bias_bytes = sum(int(b.size) * 4 for b in (b1, b2, b3, b4))
    bytes_accessed = padded_batch * d_in * 4 * 2 + weight_bytes + bias_bytes

    out = pl.pallas_call(
        _autoencoder_kernel,
        out_shape=jax.ShapeDtypeStruct((padded_batch, d_in), jnp.float32),
        grid=grid,
        in_specs=[
            x_spec,
            const_spec((d_in, d_h)), const_spec((1, d_h)),
            const_spec((d_h, d_h2)), const_spec((1, d_h2)),
            const_spec((d_h2, d_h)), const_spec((1, d_h)),
            const_spec((d_h, d_in)), const_spec((1, d_in)),
        ],
        out_specs=out_spec,
        compiler_params=pltpu.CompilerParams(
            dimension_semantics=("parallel",),          # megacore on v7x; harmless on v5e/v6e
            vmem_limit_bytes=48 * 1024 * 1024,          # fits v7x 64 MiB, raises v5e 16 MiB default
        ),
        cost_estimate=pl.CostEstimate(
            flops=flops, transcendentals=0, bytes_accessed=bytes_accessed),
    )(xp, w1, b1, w2, b2, w3, b3, w4, b4)

    # Slice the zero padding back off.
    return out[:batch, :input_dim]


def init_params(key, input_dim, hidden_dim):
    """PyTorch nn.Linear-style init; weights stored transposed to (in, out)."""
    h2 = hidden_dim // 2
    dims = [(input_dim, hidden_dim),   # encoder Linear 1
            (hidden_dim, h2),          # encoder Linear 2
            (h2, hidden_dim),          # decoder Linear 1
            (hidden_dim, input_dim)]   # decoder Linear 2
    params = {}
    for i, (fan_in, fan_out) in enumerate(dims, start=1):
        key, kw, kb = jax.random.split(key, 3)
        bound = 1.0 / jnp.sqrt(fan_in)
        params[f"w{i}"] = jax.random.uniform(
            kw, (fan_in, fan_out), jnp.float32, minval=-bound, maxval=bound)
        params[f"b{i}"] = jax.random.uniform(
            kb, (1, fan_out), jnp.float32, minval=-bound, maxval=bound)
    return params


def reference_forward(x, p, matmul_dtype=jnp.bfloat16):
    """Pure-JAX reference with the same bf16-operand / f32-accumulate matmuls."""
    def lin(h, w, b):
        return jnp.dot(h.astype(matmul_dtype), w.astype(matmul_dtype),
                       preferred_element_type=jnp.float32) + b
    h = jnp.maximum(lin(x, p["w1"], p["b1"]), 0.0)
    h = jnp.maximum(lin(h, p["w2"], p["b2"]), 0.0)
    h = jnp.maximum(lin(h, p["w3"], p["b3"]), 0.0)
    return lin(h, p["w4"], p["b4"])


if __name__ == "__main__":
    # The original script reads input_dim from a CSV; use a small synthetic value.
    # TODO(synk): training loop / DataLoader / optimizer from the original script
    # are intentionally not translated (only the module forward pass is).
    batch = 8
    input_dim = 16
    hidden_dim = 64

    key = jax.random.PRNGKey(0)
    key, kx = jax.random.split(key)
    x = jax.random.normal(kx, (batch, input_dim), dtype=jnp.float32)

    params = init_params(key, input_dim, hidden_dim)

    out = autoencoder_forward(x, params)
    out = jax.block_until_ready(out)

    ref = reference_forward(x, params)
    assert out.shape == (batch, input_dim)
    assert jnp.allclose(out, ref, atol=1e-2, rtol=1e-2), (
        float(jnp.max(jnp.abs(out - ref))))

    print("KERNEL_OK")
</pallas_src>

<mosaic_0001>
module attributes {stable_mosaic.version = 11 : i64} {
  func.func @_autoencoder_kernel(%arg0: i32, %arg1: memref<8x128xf32, #tpu.memory_space<vmem>>, %arg2: memref<128x128xbf16, #tpu.memory_space<vmem>>, %arg3: memref<1x128xf32, #tpu.memory_space<vmem>>, %arg4: memref<128x128xbf16, #tpu.memory_space<vmem>>, %arg5: memref<1x128xf32, #tpu.memory_space<vmem>>, %arg6: memref<128x128xbf16, #tpu.memory_space<vmem>>, %arg7: memref<1x128xf32, #tpu.memory_space<vmem>>, %arg8: memref<128x128xbf16, #tpu.memory_space<vmem>>, %arg9: memref<1x128xf32, #tpu.memory_space<vmem>>, %arg10: memref<8x128xf32, #tpu.memory_space<vmem>>) attributes {dimension_semantics = [#tpu.dimension_semantics<parallel>], iteration_bounds = array<i64: 1>, scalar_prefetch = 0 : i64, scratch_operands = 0 : i64, tpu.core_type = #tpu.core_type<tc>, window_params = [{transform_indices = @transform_0, window_bounds = array<i64: 8, 128>}, {pipeline_mode = #tpu.pipeline_mode<synchronous>, transform_indices = @transform_1, window_bounds = array<i64: 128, 128>}, {pipeline_mode = #tpu.pipeline_mode<synchronous>, transform_indices = @transform_2, window_bounds = array<i64: 1, 128>}, {pipeline_mode = #tpu.pipeline_mode<synchronous>, transform_indices = @transform_3, window_bounds = array<i64: 128, 128>}, {pipeline_mode = #tpu.pipeline_mode<synchronous>, transform_indices = @transform_4, window_bounds = array<i64: 1, 128>}, {pipeline_mode = #tpu.pipeline_mode<synchronous>, transform_indices = @transform_5, window_bounds = array<i64: 128, 128>}, {pipeline_mode = #tpu.pipeline_mode<synchronous>, transform_indices = @transform_6, window_bounds = array<i64: 1, 128>}, {pipeline_mode = #tpu.pipeline_mode<synchronous>, transform_indices = @transform_7, window_bounds = array<i64: 128, 128>}, {pipeline_mode = #tpu.pipeline_mode<synchronous>, transform_indices = @transform_8, window_bounds = array<i64: 1, 128>}, {transform_indices = @transform_9, window_bounds = array<i64: 8, 128>}]} {
    %c0 = arith.constant 0 : index
    %c0_0 = arith.constant 0 : index
    %0 = vector.load %arg3[%c0, %c0_0] : memref<1x128xf32, #tpu.memory_space<vmem>>, vector<1x128xf32>
    %c0_1 = arith.constant 0 : index
    %c0_2 = arith.constant 0 : index
    %1 = vector.load %arg5[%c0_1, %c0_2] : memref<1x128xf32, #tpu.memory_space<vmem>>, vector<1x128xf32>
    %c0_3 = arith.constant 0 : index
    %c0_4 = arith.constant 0 : index
    %2 = vector.load %arg7[%c0_3, %c0_4] : memref<1x128xf32, #tpu.memory_space<vmem>>, vector<1x128xf32>
    %c0_5 = arith.constant 0 : index
    %c0_6 = arith.constant 0 : index
    %3 = vector.load %arg9[%c0_5, %c0_6] : memref<1x128xf32, #tpu.memory_space<vmem>>, vector<1x128xf32>
    %c0_7 = arith.constant 0 : index
    %c0_8 = arith.constant 0 : index
    %4 = vector.load %arg1[%c0_7, %c0_8] : memref<8x128xf32, #tpu.memory_space<vmem>>, vector<8x128xf32>
    %5 = arith.truncf %4 : vector<8x128xf32> to vector<8x128xbf16>
    %c0_9 = arith.constant 0 : index
    %c0_10 = arith.constant 0 : index
    %6 = vector.load %arg2[%c0_9, %c0_10] : memref<128x128xbf16, #tpu.memory_space<vmem>>, vector<128x128xbf16>
    %cst = arith.constant dense<0.000000e+00> : vector<8x128xf32>
    %7 = tpu.matmul %5, %6, %cst {dimension_numbers = #tpu.dot_dimension_numbers<[1], [0], [0], [1], [0, 0, 1, 1], [], []>} : vector<8x128xbf16>, vector<128x128xbf16>, vector<8x128xf32> -> vector<8x128xf32>
    %8 = vector.broadcast %0 : vector<1x128xf32> to vector<8x128xf32>
    %9 = arith.addf %7, %8 : vector<8x128xf32>
    %cst_11 = arith.constant 0.000000e+00 : f32
    %10 = vector.broadcast %cst_11 : f32 to vector<8x128xf32>
    %11 = arith.maximumf %9, %10 : vector<8x128xf32>
    %12 = arith.truncf %11 : vector<8x128xf32> to vector<8x128xbf16>
    %c0_12 = arith.constant 0 : index
    %c0_13 = arith.constant 0 : index
    %13 = vector.load %arg4[%c0_12, %c0_13] : memref<128x128xbf16, #tpu.memory_space<vmem>>, vector<128x128xbf16>
    %cst_14 = arith.constant dense<0.000000e+00> : vector<8x128xf32>
    %14 = tpu.matmul %12, %13, %cst_14 {dimension_numbers = #tpu.dot_dimension_numbers<[1], [0], [0], [1], [0, 0, 1, 1], [], []>} : vector<8x128xbf16>, vector<128x128xbf16>, vector<8x128xf32> -> vector<8x128xf32>
    %15 = vector.broadcast %1 : vector<1x128xf32> to vector<8x128xf32>
    %16 = arith.addf %14, %15 : vector<8x128xf32>
    %cst_15 = arith.constant 0.000000e+00 : f32
    %17 = vector.broadcast %cst_15 : f32 to vector<8x128xf32>
    %18 = arith.maximumf %16, %17 : vector<8x128xf32>
    %19 = arith.truncf %18 : vector<8x128xf32> to vector<8x128xbf16>
    %c0_16 = arith.constant 0 : index
    %c0_17 = arith.constant 0 : index
    %20 = vector.load %arg6[%c0_16, %c0_17] : memref<128x128xbf16, #tpu.memory_space<vmem>>, vector<128x128xbf16>
    %cst_18 = arith.constant dense<0.000000e+00> : vector<8x128xf32>
    %21 = tpu.matmul %19, %20, %cst_18 {dimension_numbers = #tpu.dot_dimension_numbers<[1], [0], [0], [1], [0, 0, 1, 1], [], []>} : vector<8x128xbf16>, vector<128x128xbf16>, vector<8x128xf32> -> vector<8x128xf32>
    %22 = vector.broadcast %2 : vector<1x128xf32> to vector<8x128xf32>
    %23 = arith.addf %21, %22 : vector<8x128xf32>
    %cst_19 = arith.constant 0.000000e+00 : f32
    %24 = vector.broadcast %cst_19 : f32 to vector<8x128xf32>
    %25 = arith.maximumf %23, %24 : vector<8x128xf32>
    %26 = arith.truncf %25 : vector<8x128xf32> to vector<8x128xbf16>
    %c0_20 = arith.constant 0 : index
    %c0_21 = arith.constant 0 : index
    %27 = vector.load %arg8[%c0_20, %c0_21] : memref<128x128xbf16, #tpu.memory_space<vmem>>, vector<128x128xbf16>
    %cst_22 = arith.constant dense<0.000000e+00> : vector<8x128xf32>
    %28 = tpu.matmul %26, %27, %cst_22 {dimension_numbers = #tpu.dot_dimension_numbers<[1], [0], [0], [1], [0, 0, 1, 1], [], []>} : vector<8x128xbf16>, vector<128x128xbf16>, vector<8x128xf32> -> vector<8x128xf32>
    %29 = vector.broadcast %3 : vector<1x128xf32> to vector<8x128xf32>
    %30 = arith.addf %28, %29 : vector<8x128xf32>
    %c0_23 = arith.constant 0 : index
    %c0_24 = arith.constant 0 : index
    %31 = vector.load %arg10[%c0_23, %c0_24] : memref<8x128xf32, #tpu.memory_space<vmem>>, vector<8x128xf32>
    tpu.vector_store %arg10[%c0_23, %c0_24], %30 {strides = array<i32>} : memref<8x128xf32, #tpu.memory_space<vmem>>, vector<8x128xf32>,
    return
  }
  func.func @transform_0(%arg0: i32) -> (i32, i32) {
    %c0_i32 = arith.constant 0 : i32
    %c0_i32_0 = arith.constant 0 : i32
    return %arg0, %c0_i32 : i32, i32
  }
  func.func @transform_1(%arg0: i32) -> (i32, i32) {
    %c0_i32 = arith.constant 0 : i32
    %c0_i32_0 = arith.constant 0 : i32
    %c0_i32_1 = arith.constant 0 : i32
    return %c0_i32, %c0_i32_0 : i32, i32
  }
  func.func @transform_2(%arg0: i32) -> (i32, i32) {
    %c0_i32 = arith.constant 0 : i32
    %c0_i32_0 = arith.constant 0 : i32
    %c0_i32_1 = arith.constant 0 : i32
    return %c0_i32, %c0_i32_0 : i32, i32
  }
  func.func @transform_3(%arg0: i32) -> (i32, i32) {
    %c0_i32 = arith.constant 0 : i32
    %c0_i32_0 = arith.constant 0 : i32
    %c0_i32_1 = arith.constant 0 : i32
    return %c0_i32, %c0_i32_0 : i32, i32
  }
  func.func @transform_4(%arg0: i32) -> (i32, i32) {
    %c0_i32 = arith.constant 0 : i32
    %c0_i32_0 = arith.constant 0 : i32
    %c0_i32_1 = arith.constant 0 : i32
    return %c0_i32, %c0_i32_0 : i32, i32
  }
  func.func @transform_5(%arg0: i32) -> (i32, i32) {
    %c0_i32 = arith.constant 0 : i32
    %c0_i32_0 = arith.constant 0 : i32
    %c0_i32_1 = arith.constant 0 : i32
    return %c0_i32, %c0_i32_0 : i32, i32
  }
  func.func @transform_6(%arg0: i32) -> (i32, i32) {
    %c0_i32 = arith.constant 0 : i32
    %c0_i32_0 = arith.constant 0 : i32
    %c0_i32_1 = arith.constant 0 : i32
    return %c0_i32, %c0_i32_0 : i32, i32
  }
  func.func @transform_7(%arg0: i32) -> (i32, i32) {
    %c0_i32 = arith.constant 0 : i32
    %c0_i32_0 = arith.constant 0 : i32
    %c0_i32_1 = arith.constant 0 : i32
    return %c0_i32, %c0_i32_0 : i32, i32
  }
  func.func @transform_8(%arg0: i32) -> (i32, i32) {
    %c0_i32 = arith.constant 0 : i32
    %c0_i32_0 = arith.constant 0 : i32
    %c0_i32_1 = arith.constant 0 : i32
    return %c0_i32, %c0_i32_0 : i32, i32
  }
  func.func @transform_9(%arg0: i32) -> (i32, i32) {
    %c0_i32 = arith.constant 0 : i32
    %c0_i32_0 = arith.constant 0 : i32
    return %arg0, %c0_i32 : i32, i32
  }
}

</mosaic_0001>

<llo_original>
// kernel: autoencoder_forward.1
$region0: #{autoencoder_forward.1}
  #allocation0 [shape = 'u32[]', space=smem, size = 0x4, offset = 0x4, fixed_abs, tag = 'smem constant byte address 0x4 - core index']
  #allocation1 [shape = 'u32[144,128]{1,0:T(1,128)}', space=vmem, size = 0x12000, scoped, tag = 'internal scratch']
  %s0 = inlined_call_operand.vmem [shape: f32[8,128], index: 0, kind: input, shape index: {}]
  %s1 = inlined_call_operand.vmem [shape: bf16[128,128], index: 1, kind: input, shape index: {}]
  %s2 = inlined_call_operand.vmem [shape: f32[1,128], index: 2, kind: input, shape index: {}]
  %s3 = inlined_call_operand.vmem [shape: bf16[128,128], index: 3, kind: input, shape index: {}]
  %s4 = inlined_call_operand.vmem [shape: f32[1,128], index: 4, kind: input, shape index: {}]
  %s5 = inlined_call_operand.vmem [shape: bf16[128,128], index: 5, kind: input, shape index: {}]
  %s6 = inlined_call_operand.vmem [shape: f32[1,128], index: 6, kind: input, shape index: {}]
  %s7 = inlined_call_operand.vmem [shape: bf16[128,128], index: 7, kind: input, shape index: {}]
  %s8 = inlined_call_operand.vmem [shape: f32[1,128], index: 8, kind: input, shape index: {}]
  %s9 = inlined_call_operand.hbm [shape: f32[8,128], index: 9, kind: output, shape index: {}]
  %s10 = sld [smem:[#allocation0]]
  $region46: #{autoencoder_forward.1} parent=0
    _
  %s12 = ssub.s32 1, %s10
  %s13 = scalar_select 0, %s12, %s10
  $region1: #{autoencoder_forward.1} parent=0
    #allocation2 [shape = 'u8[4096]{0}', space=vmem, size = 0x1000, scoped, tag = 'output window, operand 0, single buffered']
    #allocation3 [shape = 's32[1]{0}', space=sflag, size = 0x4, scoped, tag = 'scoped memory for autoencoder_forward.1']
    %14 = vsyncpa [#allocation3], 0
    // Predicated region
    $region2: #{autoencoder_forward.1} parent=1 // pred_check
      _
    $region3: #{autoencoder_forward.1} parent=1 // pred_check_branch
      %16 = sbr.rel (0) target = $region5
    $region4: #{autoencoder_forward.1} parent=1 // pred_region
      _
    $region5: #{autoencoder_forward.1} parent=1 // pred_fallthru
      _
    // Predicated region
    $region6: #{autoencoder_forward.1} parent=1 // pred_check
      _
    $region7: #{autoencoder_forward.1} parent=1 // pred_check_branch
      %18 = sbr.rel (0) target = $region9
    $region8: #{autoencoder_forward.1} parent=1 // pred_region
      _
    $region9: #{autoencoder_forward.1} parent=1 // pred_fallthru
      _
    // Predicated region
    $region10: #{autoencoder_forward.1} parent=1 // pred_check
      _
    $region11: #{autoencoder_forward.1} parent=1 // pred_check_branch
      %20 = sbr.rel (0) target = $region13
    $region12: #{autoencoder_forward.1} parent=1 // pred_region
      _
    $region13: #{autoencoder_forward.1} parent=1 // pred_fallthru
      _
    // Predicated region
    $region14: #{autoencoder_forward.1} parent=1 // pred_check
      _
    $region15: #{autoencoder_forward.1} parent=1 // pred_check_branch
      %22 = sbr.rel (0) target = $region17
    $region16: #{autoencoder_forward.1} parent=1 // pred_region
      _
    $region17: #{autoencoder_forward.1} parent=1 // pred_fallthru
      _
    // Predicated region
    $region18: #{autoencoder_forward.1} parent=1 // pred_check
      _
    $region19: #{autoencoder_forward.1} parent=1 // pred_check_branch
      %24 = sbr.rel (0) target = $region21
    $region20: #{autoencoder_forward.1} parent=1 // pred_region
      _
    $region21: #{autoencoder_forward.1} parent=1 // pred_fallthru
      _
    // Predicated region
    $region22: #{autoencoder_forward.1} parent=1 // pred_check
      _
    $region23: #{autoencoder_forward.1} parent=1 // pred_check_branch
      %26 = sbr.rel (0) target = $region25
    $region24: #{autoencoder_forward.1} parent=1 // pred_region
      _
    $region25: #{autoencoder_forward.1} parent=1 // pred_fallthru
      _
    // Predicated region
    $region26: #{autoencoder_forward.1} parent=1 // pred_check
      _
    $region27: #{autoencoder_forward.1} parent=1 // pred_check_branch
      %28 = sbr.rel (0) target = $region29
    $region28: #{autoencoder_forward.1} parent=1 // pred_region
      _
    $region29: #{autoencoder_forward.1} parent=1 // pred_fallthru
      _
    // Predicated region
    $region30: #{autoencoder_forward.1} parent=1 // pred_check
      _
    $region31: #{autoencoder_forward.1} parent=1 // pred_check_branch
      %30 = sbr.rel (0) target = $region33
    $region32: #{autoencoder_forward.1} parent=1 // pred_region
      _
    $region33: #{autoencoder_forward.1} parent=1 // pred_fallthru
      _
    // Predicated region
    $region34: #{autoencoder_forward.1} parent=1 // pred_check
      _
    $region35: #{autoencoder_forward.1} parent=1 // pred_check_branch
      %32 = sbr.rel (0) target = $region37
    $region36: #{autoencoder_forward.1} parent=1 // pred_region
      _
    $region37: #{autoencoder_forward.1} parent=1 // pred_fallthru
      _
    %v34 = vld [vmem:[%s2] sm:$0x1]
    %v35 = vld [vmem:[%s4] sm:$0x1]
    %v36 = vld [vmem:[%s6] sm:$0x1]
    %v37 = vld [vmem:[%s8] sm:$0x1]
    %v38 = vld [vmem:[%s0] sm:$0xff]
    %v39 = vpack.c.bf16 %v38, %v38
    %v40 = vld [vmem:[%s1] sm:$0xf]
    %v41 = vld [vmem:[%s1 + $0x4] sm:$0xf]
    %v42 = vld [vmem:[%s1 + $0x8] sm:$0xf]
    %v43 = vld [vmem:[%s1 + $0xc] sm:$0xf]
    %v44 = vld [vmem:[%s1 + $0x10] sm:$0xf]
    %v45 = vld [vmem:[%s1 + $0x14] sm:$0xf]
    %v46 = vld [vmem:[%s1 + $0x18] sm:$0xf]
    %v47 = vld [vmem:[%s1 + $0x1c] sm:$0xf]
    %v48 = vld [vmem:[%s1 + $0x20] sm:$0xf]
    %v49 = vld [vmem:[%s1 + $0x24] sm:$0xf]
    %v50 = vld [vmem:[%s1 + $0x28] sm:$0xf]
    %v51 = vld [vmem:[%s1 + $0x2c] sm:$0xf]
    %v52 = vld [vmem:[%s1 + $0x30] sm:$0xf]
    %v53 = vld [vmem:[%s1 + $0x34] sm:$0xf]
    %v54 = vld [vmem:[%s1 + $0x38] sm:$0xf]
    %v55 = vld [vmem:[%s1 + $0x3c] sm:$0xf]
    %v57 = vlaneseq
    %v58 = vshrl.u32 %v57, 7
    %v59 = vsub.s32 0, %v58
    %v60 = vrot.slane %v34, %v59
    %v78 = vunpack.c.l.b16 %v40
    %v79 = vunpack.c.l.b16 %v41
    %v80 = vunpack.c.l.b16 %v42
    %v81 = vunpack.c.l.b16 %v43
    %v82 = vunpack.c.l.b16 %v44
    %v83 = vunpack.c.l.b16 %v45
    %v84 = vunpack.c.l.b16 %v46
    %v85 = vunpack.c.l.b16 %v47
    %v86 = vunpack.c.l.b16 %v48
    %v87 = vunpack.c.l.b16 %v49
    %v88 = vunpack.c.l.b16 %v50
    %v89 = vunpack.c.l.b16 %v51
    %v90 = vunpack.c.l.b16 %v52
    %v91 = vunpack.c.l.b16 %v53
    %v92 = vunpack.c.l.b16 %v54
    %v93 = vunpack.c.l.b16 %v55
    %v94 = vpack.c.b16 %v79, %v78
    %v95 = vpack.c.b16 %v81, %v80
    %v96 = vpack.c.b16 %v83, %v82
    %v97 = vpack.c.b16 %v85, %v84
    %v98 = vpack.c.b16 %v87, %v86
    %v99 = vpack.c.b16 %v89, %v88
    %v100 = vpack.c.b16 %v91, %v90
    %v101 = vpack.c.b16 %v93, %v92
    %110 = vmatprep.subr.bf16.mxu0 0
    %111 = vmatpush1.bf16.msra.mxu0 %v101
    %112 = vmatprep.subr.bf16.mxu0 0
    %113 = vmatpush1.bf16.msra.mxu0 %v100
    %114 = vmatprep.subr.bf16.mxu0 0
    %115 = vmatpush1.bf16.msra.mxu0 %v99
    %116 = vmatprep.subr.bf16.mxu0 0
    %117 = vmatpush1.bf16.msra.mxu0 %v98
    %118 = vmatprep.subr.bf16.mxu0 0
    %119 = vmatpush1.bf16.msra.mxu0 %v97
    %120 = vmatprep.subr.bf16.mxu0 0
    %121 = vmatpush1.bf16.msra.mxu0 %v96
    %122 = vmatprep.subr.bf16.mxu0 0
    %123 = vmatpush1.bf16.msra.mxu0 %v95
    %124 = vmatprep.subr.bf16.mxu0 0
    %125 = vmatpush1.bf16.msra.mxu0 %v94
    %126 = vmatprep.subr.bf16.mxu0 0
    %127 = vmatpush2.bf16.msra.mxu0 0
    %128 = vmatprep.subr.bf16.mxu0 0
    %129 = vmatpush2.bf16.msra.mxu0 0
    %130 = vmatprep.subr.bf16.mxu0 0
    %131 = vmatpush2.bf16.msra.mxu0 0
    %132 = vmatprep.subr.bf16.mxu0 0
    %133 = vmatpush2.bf16.msra.mxu0 0
    %134 = vmatprep.subr.bf16.mxu0 0
    %135 = vmatpush2.bf16.msra.mxu0 0
    %136 = vmatprep.subr.bf16.mxu0 0
    %137 = vmatpush2.bf16.msra.mxu0 0
    %138 = vmatprep.subr.bf16.mxu0 0
    %139 = vmatpush2.bf16.msra.mxu0 0
    %140 = vmatprep.subr.bf16.mxu0 0
    %141 = vmatpush2.bf16.msra.mxu0 0
    %142 = vmatprep.mubr.bf16.mxu0 0
    %143 = vmatmul.mubr.bf16.gmra.mxu0 %v39
    %v144 = vpop.f32.mrf.mxu0
    %v145 = vadd.f32 %v60, %v144
    %v146 = vpop.f32.mrf.mxu0
    %v147 = vpop.f32.mrf.mxu0
    %v148 = vpop.f32.mrf.mxu0
    %149 = vdwg.mxu0
    %v150 = vmax.f32 %v145, 0.0
    %v151 = vpack.c.bf16 %v150, %v150
    %v152 = vld [vmem:[%s3] sm:$0xf]
    %v153 = vld [vmem:[%s3 + $0x4] sm:$0xf]
    %v154 = vld [vmem:[%s3 + $0x8] sm:$0xf]
    %v155 = vld [vmem:[%s3 + $0xc] sm:$0xf]
    %v156 = vld [vmem:[%s3 + $0x10] sm:$0xf]
    %v157 = vld [vmem:[%s3 + $0x14] sm:$0xf]
    %v158 = vld [vmem:[%s3 + $0x18] sm:$0xf]
    %v159 = vld [vmem:[%s3 + $0x1c] sm:$0xf]
    %v160 = vld [vmem:[%s3 + $0x20] sm:$0xf]
    %v161 = vld [vmem:[%s3 + $0x24] sm:$0xf]
    %v162 = vld [vmem:[%s3 + $0x28] sm:$0xf]
    %v163 = vld [vmem:[%s3 + $0x2c] sm:$0xf]
    %v164 = vld [vmem:[%s3 + $0x30] sm:$0xf]
    %v165 = vld [vmem:[%s3 + $0x34] sm:$0xf]
    %v166 = vld [vmem:[%s3 + $0x38] sm:$0xf]
    %v167 = vld [vmem:[%s3 + $0x3c] sm:$0xf]
    %v169 = vlaneseq
    %v170 = vshrl.u32 %v169, 7
    %v171 = vsub.s32 0, %v170
    %v172 = vrot.slane %v35, %v171
    %v190 = vunpack.c.l.b16 %v152
    %v191 = vunpack.c.l.b16 %v153
    %v192 = vunpack.c.l.b16 %v154
    %v193 = vunpack.c.l.b16 %v155
    %v194 = vunpack.c.l.b16 %v156
    %v195 = vunpack.c.l.b16 %v157
    %v196 = vunpack.c.l.b16 %v158
    %v197 = vunpack.c.l.b16 %v159
    %v198 = vunpack.c.l.b16 %v160
    %v199 = vunpack.c.l.b16 %v161
    %v200 = vunpack.c.l.b16 %v162
    %v201 = vunpack.c.l.b16 %v163
    %v202 = vunpack.c.l.b16 %v164
    %v203 = vunpack.c.l.b16 %v165
    %v204 = vunpack.c.l.b16 %v166
    %v205 = vunpack.c.l.b16 %v167
    %v206 = vpack.c.b16 %v191, %v190
    %v207 = vpack.c.b16 %v193, %v192
    %v208 = vpack.c.b16 %v195, %v194
    %v209 = vpack.c.b16 %v197, %v196
    %v210 = vpack.c.b16 %v199, %v198
    %v211 = vpack.c.b16 %v201, %v200
    %v212 = vpack.c.b16 %v203, %v202
    %v213 = vpack.c.b16 %v205, %v204
    %222 = vmatprep.subr.bf16.mxu0 0
    %223 = vmatpush1.bf16.msra.mxu0 %v213
    %224 = vmatprep.subr.bf16.mxu0 0
    %225 = vmatpush1.bf16.msra.mxu0 %v212
    %226 = vmatprep.subr.bf16.mxu0 0
    %227 = vmatpush1.bf16.msra.mxu0 %v211
    %228 = vmatprep.subr.bf16.mxu0 0
    %229 = vmatpush1.bf16.msra.mxu0 %v210
    %230 = vmatprep.subr.bf16.mxu0 0
    %231 = vmatpush1.bf16.msra.mxu0 %v209
    %232 = vmatprep.subr.bf16.mxu0 0
    %233 = vmatpush1.bf16.msra.mxu0 %v208
    %234 = vmatprep.subr.bf16.mxu0 0
    %235 = vmatpush1.bf16.msra.mxu0 %v207
    %236 = vmatprep.subr.bf16.mxu0 0
    %237 = vmatpush1.bf16.msra.mxu0 %v206
    %238 = vmatprep.subr.bf16.mxu0 0
    %239 = vmatpush2.bf16.msra.mxu0 0
    %240 = vmatprep.subr.bf16.mxu0 0
    %241 = vmatpush2.bf16.msra.mxu0 0
    %242 = vmatprep.subr.bf16.mxu0 0
    %243 = vmatpush2.bf16.msra.mxu0 0
    %244 = vmatprep.subr.bf16.mxu0 0
    %245 = vmatpush2.bf16.msra.mxu0 0
    %246 = vmatprep.subr.bf16.mxu0 0
    %247 = vmatpush2.bf16.msra.mxu0 0
    %248 = vmatprep.subr.bf16.mxu0 0
    %249 = vmatpush2.bf16.msra.mxu0 0
    %250 = vmatprep.subr.bf16.mxu0 0
    %251 = vmatpush2.bf16.msra.mxu0 0
    %252 = vmatprep.subr.bf16.mxu0 0
    %253 = vmatpush2.bf16.msra.mxu0 0
    %254 = vmatprep.mubr.bf16.mxu0 0
    %255 = vmatmul.mubr.bf16.gmra.mxu0 %v151
    %v256 = vpop.f32.mrf.mxu0
    %v257 = vadd.f32 %v172, %v256
    %v258 = vpop.f32.mrf.mxu0
    %v259 = vpop.f32.mrf.mxu0
    %v260 = vpop.f32.mrf.mxu0
    %261 = vdwg.mxu0
    %v262 = vmax.f32 %v257, 0.0
    %v263 = vpack.c.bf16 %v262, %v262
    %v264 = vld [vmem:[%s5] sm:$0xf]
    %v265 = vld [vmem:[%s5 + $0x4] sm:$0xf]
    %v266 = vld [vmem:[%s5 + $0x8] sm:$0xf]
    %v267 = vld [vmem:[%s5 + $0xc] sm:$0xf]
    %v268 = vld [vmem:[%s5 + $0x10] sm:$0xf]
    %v269 = vld [vmem:[%s5 + $0x14] sm:$0xf]
    %v270 = vld [vmem:[%s5 + $0x18] sm:$0xf]
    %v271 = vld [vmem:[%s5 + $0x1c] sm:$0xf]
    %v272 = vld [vmem:[%s5 + $0x20] sm:$0xf]
    %v273 = vld [vmem:[%s5 + $0x24] sm:$0xf]
    %v274 = vld [vmem:[%s5 + $0x28] sm:$0xf]
    %v275 = vld [vmem:[%s5 + $0x2c] sm:$0xf]
    %v276 = vld [vmem:[%s5 + $0x30] sm:$0xf]
    %v277 = vld [vmem:[%s5 + $0x34] sm:$0xf]
    %v278 = vld [vmem:[%s5 + $0x38] sm:$0xf]
    %v279 = vld [vmem:[%s5 + $0x3c] sm:$0xf]
    %v281 = vlaneseq
    %v282 = vshrl.u32 %v281, 7
    %v283 = vsub.s32 0, %v282
    %v284 = vrot.slane %v36, %v283
    %v302 = vunpack.c.l.b16 %v264
    %v303 = vunpack.c.l.b16 %v265
    %v304 = vunpack.c.l.b16 %v266
    %v305 = vunpack.c.l.b16 %v267
    %v306 = vunpack.c.l.b16 %v268
    %v307 = vunpack.c.l.b16 %v269
    %v308 = vunpack.c.l.b16 %v270
    %v309 = vunpack.c.l.b16 %v271
    %v310 = vunpack.c.l.b16 %v272
    %v311 = vunpack.c.l.b16 %v273
    %v312 = vunpack.c.l.b16 %v274
    %v313 = vunpack.c.l.b16 %v275
    %v314 = vunpack.c.l.b16 %v276
    %v315 = vunpack.c.l.b16 %v277
    %v316 = vunpack.c.l.b16 %v278
    %v317 = vunpack.c.l.b16 %v279
    %v318 = vpack.c.b16 %v303, %v302
    %v319 = vpack.c.b16 %v305, %v304
    %v320 = vpack.c.b16 %v307, %v306
    %v321 = vpack.c.b16 %v309, %v308
    %v322 = vpack.c.b16 %v311, %v310
    %v323 = vpack.c.b16 %v313, %v312
    %v324 = vpack.c.b16 %v315, %v314
    %v325 = vpack.c.b16 %v317, %v316
    %334 = vmatprep.subr.bf16.mxu0 0
    %335 = vmatpush1.bf16.msra.mxu0 %v325
    %336 = vmatprep.subr.bf16.mxu0 0
    %337 = vmatpush1.bf16.msra.mxu0 %v324
    %338 = vmatprep.subr.bf16.mxu0 0
    %339 = vmatpush1.bf16.msra.mxu0 %v323
    %340 = vmatprep.subr.bf16.mxu0 0
    %341 = vmatpush1.bf16.msra.mxu0 %v322
    %342 = vmatprep.subr.bf16.mxu0 0
    %343 = vmatpush1.bf16.msra.mxu0 %v321
    %344 = vmatprep.subr.bf16.mxu0 0
    %345 = vmatpush1.bf16.msra.mxu0 %v320
    %346 = vmatprep.subr.bf16.mxu0 0
    %347 = vmatpush1.bf16.msra.mxu0 %v319
    %348 = vmatprep.subr.bf16.mxu0 0
    %349 = vmatpush1.bf16.msra.mxu0 %v318
    %350 = vmatprep.subr.bf16.mxu0 0
    %351 = vmatpush2.bf16.msra.mxu0 0
    %352 = vmatprep.subr.bf16.mxu0 0
    %353 = vmatpush2.bf16.msra.mxu0 0
    %354 = vmatprep.subr.bf16.mxu0 0
    %355 = vmatpush2.bf16.msra.mxu0 0
    %356 = vmatprep.subr.bf16.mxu0 0
    %357 = vmatpush2.bf16.msra.mxu0 0
    %358 = vmatprep.subr.bf16.mxu0 0
    %359 = vmatpush2.bf16.msra.mxu0 0
    %360 = vmatprep.subr.bf16.mxu0 0
    %361 = vmatpush2.bf16.msra.mxu0 0
    %362 = vmatprep.subr.bf16.mxu0 0
    %363 = vmatpush2.bf16.msra.mxu0 0
    %364 = vmatprep.subr.bf16.mxu0 0
    %365 = vmatpush2.bf16.msra.mxu0 0
    %366 = vmatprep.mubr.bf16.mxu0 0
    %367 = vmatmul.mubr.bf16.gmra.mxu0 %v263
    %v368 = vpop.f32.mrf.mxu0
    %v369 = vadd.f32 %v284, %v368
    %v370 = vpop.f32.mrf.mxu0
    %v371 = vpop.f32.mrf.mxu0
    %v372 = vpop.f32.mrf.mxu0
    %373 = vdwg.mxu0
    %v374 = vmax.f32 %v369, 0.0
    %v375 = vpack.c.bf16 %v374, %v374
    %v376 = vld [vmem:[%s7] sm:$0xf]
    %v377 = vld [vmem:[%s7 + $0x4] sm:$0xf]
    %v378 = vld [vmem:[%s7 + $0x8] sm:$0xf]
    %v379 = vld [vmem:[%s7 + $0xc] sm:$0xf]
    %v380 = vld [vmem:[%s7 + $0x10] sm:$0xf]
    %v381 = vld [vmem:[%s7 + $0x14] sm:$0xf]
    %v382 = vld [vmem:[%s7 + $0x18] sm:$0xf]
    %v383 = vld [vmem:[%s7 + $0x1c] sm:$0xf]
    %v384 = vld [vmem:[%s7 + $0x20] sm:$0xf]
    %v385 = vld [vmem:[%s7 + $0x24] sm:$0xf]
    %v386 = vld [vmem:[%s7 + $0x28] sm:$0xf]
    %v387 = vld [vmem:[%s7 + $0x2c] sm:$0xf]
    %v388 = vld [vmem:[%s7 + $0x30] sm:$0xf]
    %v389 = vld [vmem:[%s7 + $0x34] sm:$0xf]
    %v390 = vld [vmem:[%s7 + $0x38] sm:$0xf]
    %v391 = vld [vmem:[%s7 + $0x3c] sm:$0xf]
    %v393 = vlaneseq
    %v394 = vshrl.u32 %v393, 7
    %v395 = vsub.s32 0, %v394
    %v396 = vrot.slane %v37, %v395
    %v414 = vunpack.c.l.b16 %v376
    %v415 = vunpack.c.l.b16 %v377
    %v416 = vunpack.c.l.b16 %v378
    %v417 = vunpack.c.l.b16 %v379
    %v418 = vunpack.c.l.b16 %v380
    %v419 = vunpack.c.l.b16 %v381
    %v420 = vunpack.c.l.b16 %v382
    %v421 = vunpack.c.l.b16 %v383
    %v422 = vunpack.c.l.b16 %v384
    %v423 = vunpack.c.l.b16 %v385
    %v424 = vunpack.c.l.b16 %v386
    %v425 = vunpack.c.l.b16 %v387
    %v426 = vunpack.c.l.b16 %v388
    %v427 = vunpack.c.l.b16 %v389
    %v428 = vunpack.c.l.b16 %v390
    %v429 = vunpack.c.l.b16 %v391
    %v430 = vpack.c.b16 %v415, %v414
    %v431 = vpack.c.b16 %v417, %v416
    %v432 = vpack.c.b16 %v419, %v418
    %v433 = vpack.c.b16 %v421, %v420
    %v434 = vpack.c.b16 %v423, %v422
    %v435 = vpack.c.b16 %v425, %v424
    %v436 = vpack.c.b16 %v427, %v426
    %v437 = vpack.c.b16 %v429, %v428
    %446 = vmatprep.subr.bf16.mxu0 0
    %447 = vmatpush1.bf16.msra.mxu0 %v437
    %448 = vmatprep.subr.bf16.mxu0 0
    %449 = vmatpush1.bf16.msra.mxu0 %v436
    %450 = vmatprep.subr.bf16.mxu0 0
    %451 = vmatpush1.bf16.msra.mxu0 %v435
    %452 = vmatprep.subr.bf16.mxu0 0
    %453 = vmatpush1.bf16.msra.mxu0 %v434
    %454 = vmatprep.subr.bf16.mxu0 0
    %455 = vmatpush1.bf16.msra.mxu0 %v433
    %456 = vmatprep.subr.bf16.mxu0 0
    %457 = vmatpush1.bf16.msra.mxu0 %v432
    %458 = vmatprep.subr.bf16.mxu0 0
    %459 = vmatpush1.bf16.msra.mxu0 %v431
    %460 = vmatprep.subr.bf16.mxu0 0
    %461 = vmatpush1.bf16.msra.mxu0 %v430
    %462 = vmatprep.subr.bf16.mxu0 0
    %463 = vmatpush2.bf16.msra.mxu0 0
    %464 = vmatprep.subr.bf16.mxu0 0
    %465 = vmatpush2.bf16.msra.mxu0 0
    %466 = vmatprep.subr.bf16.mxu0 0
    %467 = vmatpush2.bf16.msra.mxu0 0
    %468 = vmatprep.subr.bf16.mxu0 0
    %469 = vmatpush2.bf16.msra.mxu0 0
    %470 = vmatprep.subr.bf16.mxu0 0
    %471 = vmatpush2.bf16.msra.mxu0 0
    %472 = vmatprep.subr.bf16.mxu0 0
    %473 = vmatpush2.bf16.msra.mxu0 0
    %474 = vmatprep.subr.bf16.mxu0 0
    %475 = vmatpush2.bf16.msra.mxu0 0
    %476 = vmatprep.subr.bf16.mxu0 0
    %477 = vmatpush2.bf16.msra.mxu0 0
    %478 = vmatprep.mubr.bf16.mxu0 0
    %479 = vmatmul.mubr.bf16.gmra.mxu0 %v375
    %v480 = vpop.f32.mrf.mxu0
    %v481 = vadd.f32 %v396, %v480
    %v482 = vpop.f32.mrf.mxu0
    %v483 = vpop.f32.mrf.mxu0
    %v484 = vpop.f32.mrf.mxu0
    %485 = vdwg.mxu0
    %486 = vst [vmem:[#allocation2] sm:$0xff] %v481
    // Predicated region
    $region38: #{autoencoder_forward.1} parent=1 // pred_check
      _
    $region39: #{autoencoder_forward.1} parent=1 // pred_check_branch
      %488 = sbr.rel (0) target = $region41
    $region40: #{autoencoder_forward.1} parent=1 // pred_region
      %s490 = ssub.s32 128, 128
      %491 = vsyncadd [#allocation3], %s490
      %s493 = sshll.u32 [#allocation2], 4
      %s494 = int_to_ptr.vmem [resolvable:$true] %s493
      %496 = dma.vmem_to_hbm [thread:$0]  %s494, 128, %s9, [#allocation3]
    $region41: #{autoencoder_forward.1} parent=1 // pred_fallthru
      _
    // Predicated region
    $region42: #{autoencoder_forward.1} parent=1 // pred_check
      _
    $region43: #{autoencoder_forward.1} parent=1 // pred_check_branch
      %498 = sbr.rel (0) target = $region45
    $region44: #{autoencoder_forward.1} parent=1 // pred_region
      %499 = dma.done [#allocation3], 128
    $region45: #{autoencoder_forward.1} parent=1 // pred_fallthru
      _
    %500 = vsyncpa [#allocation3], 1

</llo_original>
